<compile_context>
chip_gen: v7x
topology: tpu7x:2x2x1
jax: 0.10.0
libtpu: 0.0.40
codegen_flags: <defaults>
</compile_context>

<pallas_src>
import jax
import jax.numpy as jnp
from jax.experimental import pallas as pl
from jax.experimental.pallas import tpu as pltpu

LANE = 128
TARGET_BUF_BYTES = 2 * 1024 * 1024          # ~2 MiB per VMEM buffer (x4 double-buffered in+out)
_SUBLANE = {4: 8, 2: 16, 1: 32}             # sublane packing multiple per itemsize


def _round_up(a, b):
    return ((a + b - 1) // b) * b


def _drop_path_kernel(x_ref, scale_ref, o_ref):
    # x_ref / o_ref : (TR, 128) lane-dense tile of rows
    # scale_ref     : (TR, 1) per-row scale in x.dtype (0 or 1/keep_prob)
    o_ref[...] = x_ref[...] * scale_ref[...]


def _run_rows(x2, scale_rows):
    """x2: (RT, 128) rows, scale_rows: (RT, 1) same dtype. Returns x2 * scale_rows."""
    RT = int(x2.shape[0])
    itemsize = jnp.dtype(x2.dtype).itemsize
    sub = _SUBLANE.get(itemsize, 8)
    tr_target = max(sub, (TARGET_BUF_BYTES // (LANE * itemsize)) // sub * sub)
    tr = min(tr_target, _round_up(RT, sub))
    grid = (pl.cdiv(RT, tr),)               # ragged last block is fine

    return pl.pallas_call(
        _drop_path_kernel,
        out_shape=jax.ShapeDtypeStruct((RT, LANE), x2.dtype),
        grid=grid,
        in_specs=[
            pl.BlockSpec((tr, LANE), lambda i: (i, 0)),
            pl.BlockSpec((tr, 1), lambda i: (i, 0)),
        ],
        out_specs=pl.BlockSpec((tr, LANE), lambda i: (i, 0)),
        compiler_params=pltpu.CompilerParams(
            dimension_semantics=("parallel",),
            vmem_limit_bytes=32 * 1024 * 1024,   # headroom for v5e's 16 MiB scoped default
        ),
        cost_estimate=pl.CostEstimate(
            flops=RT * LANE,
            transcendentals=0,
            bytes_accessed=2 * RT * LANE * itemsize + RT * itemsize,
        ),
        input_output_aliases={0: 0},         # DropPath_ is effectively in-place
    )(x2, scale_rows)


def drop_path(x, drop_prob, *, key, training=True):
    """x: (N, C, H, W) (any trailing dims work); returns the same shape/dtype."""
    if (not training) or float(drop_prob) <= 0.0:
        return x                              # identity, exactly like the PyTorch module

    keep_prob = 1.0 - float(drop_prob)
    N = int(x.shape[0])
    F = 1
    for d in x.shape[1:]:
        F *= int(d)

    # Per-sample Bernoulli mask -> scale in {0, 1/keep_prob}; pre-cast to x.dtype so
    # the hot loop is one native-dtype multiply per element.
    mask = jax.random.bernoulli(key, p=keep_prob, shape=(N,))
    scale = (mask.astype(jnp.float32) / jnp.float32(keep_prob)).astype(x.dtype)

    def run(xr, r_per_sample):
        x2 = xr.reshape(N * r_per_sample, LANE)
        scale_rows = jnp.broadcast_to(scale[:, None], (N, r_per_sample)).reshape(
            N * r_per_sample, 1
        )
        return _run_rows(x2, scale_rows)

    if F % LANE == 0:                         # typical CNN shapes: pure view, no pad/slice
        R = F // LANE
        return run(x, R).reshape(x.shape)

    # Rare path: F not a multiple of 128 -> kernel on the lane-aligned bulk, tiny ragged
    # tail handled by a fused jnp multiply (avoids a full-tensor pad + slice round trip).
    xf = x.reshape(N, F)
    Fb = (F // LANE) * LANE
    tail = (xf[:, Fb:] * scale[:, None]).astype(x.dtype)
    if Fb == 0:
        return tail.reshape(x.shape)
    Rb = Fb // LANE
    bulk = run(xf[:, :Fb], Rb).reshape(N, Fb)
    return jnp.concatenate([bulk, tail], axis=1).reshape(x.shape)


if __name__ == "__main__":
    key = jax.random.PRNGKey(0)
    k_x, k_mask, k_x2 = jax.random.split(key, 3)

    N, C, H, W = 2, 4, 16, 16
    drop_prob = 0.5
    keep_prob = 1.0 - drop_prob

    x = jax.random.normal(k_x, (N, C, H, W), dtype=jnp.float32)

    # training-mode forward through the Pallas kernel (F = 1024, multiple of 128)
    out = jax.block_until_ready(drop_path(x, drop_prob, key=k_mask, training=True))

    # plain-JAX reference with the identical per-sample mask
    mask = jax.random.bernoulli(k_mask, p=keep_prob, shape=(N,)).astype(jnp.float32)
    ref = x * (mask / jnp.float32(keep_prob)).reshape(N, 1, 1, 1)
    assert out.shape == x.shape, out.shape
    assert jnp.allclose(out, ref, atol=1e-6, rtol=1e-6), float(jnp.max(jnp.abs(out - ref)))

    # non-128-multiple feature size exercises the bulk-kernel + jnp-tail path
    x2 = jax.random.normal(k_x2, (N, 3, 16, 10), dtype=jnp.float32)   # F = 480
    out2 = jax.block_until_ready(drop_path(x2, drop_prob, key=k_mask, training=True))
    ref2 = x2 * (mask / jnp.float32(keep_prob)).reshape(N, 1, 1, 1)
    assert jnp.allclose(out2, ref2, atol=1e-6, rtol=1e-6)

    # eval / drop_prob == 0 paths are the identity
    assert jnp.array_equal(drop_path(x, drop_prob, key=k_mask, training=False), x)
    assert jnp.array_equal(drop_path(x, 0.0, key=k_mask, training=True), x)

    print("KERNEL_OK")
</pallas_src>

<mosaic_0001>
module attributes {stable_mosaic.version = 11 : i64} {
  func.func @_drop_path_kernel(%arg0: i32, %arg1: memref<16x128xf32, #tpu.memory_space<vmem>>, %arg2: memref<16x1xf32, #tpu.memory_space<vmem>>, %arg3: memref<16x128xf32, #tpu.memory_space<vmem>>) attributes {dimension_semantics = [#tpu.dimension_semantics<parallel>], iteration_bounds = array<i64: 1>, scalar_prefetch = 0 : i64, scratch_operands = 0 : i64, tpu.core_type = #tpu.core_type<tc>, window_params = [{transform_indices = @transform_0, window_bounds = array<i64: 16, 128>}, {transform_indices = @transform_1, window_bounds = array<i64: 16, 1>}, {transform_indices = @transform_2, window_bounds = array<i64: 16, 128>}]} {
    %c0 = arith.constant 0 : index
    %c0_0 = arith.constant 0 : index
    %0 = vector.load %arg1[%c0, %c0_0] : memref<16x128xf32, #tpu.memory_space<vmem>>, vector<16x128xf32>
    %c0_1 = arith.constant 0 : index
    %c0_2 = arith.constant 0 : index
    %1 = vector.load %arg2[%c0_1, %c0_2] : memref<16x1xf32, #tpu.memory_space<vmem>>, vector<16x1xf32>
    %2 = vector.broadcast %1 : vector<16x1xf32> to vector<16x128xf32>
    %3 = arith.mulf %0, %2 : vector<16x128xf32>
    %c0_3 = arith.constant 0 : index
    %c0_4 = arith.constant 0 : index
    %4 = vector.load %arg3[%c0_3, %c0_4] : memref<16x128xf32, #tpu.memory_space<vmem>>, vector<16x128xf32>
    tpu.vector_store %arg3[%c0_3, %c0_4], %3 {strides = array<i32>} : memref<16x128xf32, #tpu.memory_space<vmem>>, vector<16x128xf32>,
    return
  }
  func.func @transform_0(%arg0: i32) -> (i32, i32) {
    %c0_i32 = arith.constant 0 : i32
    %c0_i32_0 = arith.constant 0 : i32
    return %arg0, %c0_i32 : i32, i32
  }
  func.func @transform_1(%arg0: i32) -> (i32, i32) {
    %c0_i32 = arith.constant 0 : i32
    %c0_i32_0 = arith.constant 0 : i32
    return %arg0, %c0_i32 : i32, i32
  }
  func.func @transform_2(%arg0: i32) -> (i32, i32) {
    %c0_i32 = arith.constant 0 : i32
    %c0_i32_0 = arith.constant 0 : i32
    return %arg0, %c0_i32 : i32, i32
  }
}

</mosaic_0001>

<llo_original>
// kernel: tpu_custom_call.1
$region0: #{tpu_custom_call.1}
  #allocation0 [shape = 'u32[]', space=smem, size = 0x4, offset = 0x4, fixed_abs, tag = 'smem constant byte address 0x4 - core index']
  #allocation1 [shape = 'u32[144,128]{1,0:T(1,128)}', space=vmem, size = 0x12000, scoped, tag = 'internal scratch']
  %s0 = inlined_call_operand.hbm [shape: f32[16,128], index: 0, kind: input, shape index: {}, may-alias: {0,2}]
  %s1 = inlined_call_operand.vmem [shape: f32[16,1], index: 1, kind: input, shape index: {}]
  %s2 = inlined_call_operand.hbm [shape: f32[16,128], index: 2, kind: output, shape index: {}, may-alias: {0,2}]
  %s3 = sld [smem:[#allocation0]]
  $region22: #{tpu_custom_call.1} parent=0
    _
  %s5 = ssub.s32 1, %s3
  %s6 = scalar_select 0, %s5, %s3
  $region1: #{tpu_custom_call.1} parent=0
    #allocation2 [shape = 'u8[8192]{0}', space=vmem, size = 0x2000, scoped, tag = 'input window, operand 0, single buffered']
    #allocation3 [shape = 's32[1]{0}', space=sflag, size = 0x4, scoped, tag = 'scoped memory for tpu_custom_call.1']
    #allocation4 [shape = 's32[1]{0}', space=sflag, size = 0x4, scoped, tag = 'scoped memory for tpu_custom_call.1']
    #allocation5 [shape = 'u8[8192]{0}', space=vmem, size = 0x2000, scoped, tag = 'output window, operand 0, single buffered']
    %7 = vsyncpa [#allocation3], 0
    %8 = vsyncpa [#allocation4], 0
    // Predicated region
    $region2: #{tpu_custom_call.1} parent=1 // pred_check
      _
    $region3: #{tpu_custom_call.1} parent=1 // pred_check_branch
      %10 = sbr.rel (0) target = $region5
    $region4: #{tpu_custom_call.1} parent=1 // pred_region
      %s12 = ssub.s32 256, 256
      %13 = vsyncadd [#allocation3], %s12
      %s14 = sshll.u32 [#allocation2], 4
      %s15 = int_to_ptr.vmem [resolvable:$true] %s14
      %20 = dma.hbm_to_vmem [thread:$0]  %s0, 256, %s15, [#allocation3], 128, 128, 8
    $region5: #{tpu_custom_call.1} parent=1 // pred_fallthru
      _
    // Predicated region
    $region6: #{tpu_custom_call.1} parent=1 // pred_check
      _
    $region7: #{tpu_custom_call.1} parent=1 // pred_check_branch
      %22 = sbr.rel (0) target = $region9
    $region8: #{tpu_custom_call.1} parent=1 // pred_region
      _
    $region9: #{tpu_custom_call.1} parent=1 // pred_fallthru
      _
    // Predicated region
    $region10: #{tpu_custom_call.1} parent=1 // pred_check
      _
    $region11: #{tpu_custom_call.1} parent=1 // pred_check_branch
      %24 = sbr.rel (0) target = $region13
    $region12: #{tpu_custom_call.1} parent=1 // pred_region
      %25 = dma.done [#allocation3], 256
    $region13: #{tpu_custom_call.1} parent=1 // pred_fallthru
      _
    %v26 = vld [vmem:[#allocation2] sm:$0xff]
    %v27 = vld [vmem:[#allocation2 + $0x8] sm:$0xff]
    %v28 = vld [vmem:[%s1] sm:$0xff]
    %v29 = vld [vmem:[%s1 + $0x8] sm:$0xff]
    %31 = vset.pattern.permute.xlu0 0
    %32 = vperm.xlu0 %31, %v28
    %v33 = vpop.permute.xlu0 %32
    %36 = vset.pattern.permute.xlu0 0
    %37 = vperm.xlu0 %36, %v29
    %v38 = vpop.permute.xlu0 %37
    %v40 = vmul.f32 %v26, %v33
    %v41 = vmul.f32 %v27, %v38
    %42 = vst [vmem:[#allocation5] sm:$0xff] %v40
    %43 = vst [vmem:[#allocation5 + $0x8] sm:$0xff] %v41
    // Predicated region
    $region14: #{tpu_custom_call.1} parent=1 // pred_check
      _
    $region15: #{tpu_custom_call.1} parent=1 // pred_check_branch
      %45 = sbr.rel (0) target = $region17
    $region16: #{tpu_custom_call.1} parent=1 // pred_region
      %s47 = ssub.s32 256, 256
      %48 = vsyncadd [#allocation4], %s47
      %s49 = sshll.u32 [#allocation5], 4
      %s50 = int_to_ptr.vmem [resolvable:$true] %s49
      %55 = dma.vmem_to_hbm [thread:$0]  %s50, 256, %s2, [#allocation4], 128, 128, 8
    $region17: #{tpu_custom_call.1} parent=1 // pred_fallthru
      _
    // Predicated region
    $region18: #{tpu_custom_call.1} parent=1 // pred_check
      _
    $region19: #{tpu_custom_call.1} parent=1 // pred_check_branch
      %57 = sbr.rel (0) target = $region21
    $region20: #{tpu_custom_call.1} parent=1 // pred_region
      %58 = dma.done [#allocation4], 256
    $region21: #{tpu_custom_call.1} parent=1 // pred_fallthru
      _
    %59 = vsyncpa [#allocation3], 1
    %60 = vsyncpa [#allocation4], 1

</llo_original>
